<compile_context>
chip_gen: v7x
topology: tpu7x:2x2x1
jax: 0.10.0
libtpu: 0.0.40
codegen_flags: <defaults>
</compile_context>

<pallas_src>
import jax
import jax.numpy as jnp
from jax.experimental import pallas as pl
from jax.experimental.pallas import tpu as pltpu


def _round_up(n, m):
    return (n + m - 1) // m * m


def _cdiv(a, b):
    return (a + b - 1) // b


def _actor_critic_kernel(x_ref, w1_ref, b12_ref, w2_ref, wh_ref, bh_ref, out_ref):
    """Fused 2-layer MLP + (actor | critic) head; one lane-dense output store."""
    cdt = w1_ref.dtype  # MXU operand dtype (f32 or bf16)
    x = x_ref[...]
    # fc layer 1 + ReLU (bias-add / ReLU stay f32: v5e VPU/EUP have no bf16)
    h = jnp.dot(x, w1_ref[...], preferred_element_type=jnp.float32) + b12_ref[0:1, :]
    h = jnp.maximum(h, 0.0).astype(cdt)
    # fc layer 2 + ReLU
    h = jnp.dot(h, w2_ref[...], preferred_element_type=jnp.float32) + b12_ref[1:2, :]
    h = jnp.maximum(h, 0.0).astype(cdt)
    # fused (actor | critic) head -> single lane-dense (block_b, 128) store
    out = jnp.dot(h, wh_ref[...], preferred_element_type=jnp.float32) + bh_ref[...]
    out_ref[...] = out.astype(out_ref.dtype)


def pack_params(params, action_dim, compute_dtype=jnp.float32):
    """Pack torch-style params into the fused/padded layout the kernel uses.

    Matmul operands (w1, w2, fused head weight) are cast to `compute_dtype`
    (bf16 recommended on v6e/v7x); biases stay f32 for the f32 bias-add/ReLU.
    """
    w1, b1, w2, b2, wa, ba, wc, bc = params
    hidden = w1.shape[1]
    head_pad = _round_up(action_dim + 1, 128)  # lane-dense head width

    wh = jnp.zeros((hidden, head_pad), jnp.float32)
    wh = wh.at[:, :action_dim].set(wa)
    wh = wh.at[:, action_dim:action_dim + 1].set(wc)

    bh = jnp.zeros((1, head_pad), jnp.float32)
    bh = bh.at[:, :action_dim].set(ba)
    bh = bh.at[:, action_dim:action_dim + 1].set(bc)

    b12 = jnp.concatenate([b1, b2], axis=0).astype(jnp.float32)  # (2, hidden)
    return (
        w1.astype(compute_dtype),
        b12,
        w2.astype(compute_dtype),
        wh.astype(compute_dtype),
        bh,
    )


def actor_critic_forward(x, packed_params, action_dim, *,
                         max_block_b=1024, out_dtype=None, min_batch_tiles=None):
    """Pallas forward pass. Returns (logits (B, action_dim) f32, value (B,) f32)."""
    w1, b12, w2, wh, bh = packed_params
    compute_dtype = w1.dtype
    if out_dtype is None:
        out_dtype = compute_dtype
    batch, input_dim = x.shape
    hidden = w1.shape[1]
    head_pad = wh.shape[1]

    # Cast x before the call so the dominant x HBM read stream is already in
    # the (possibly bf16) compute dtype.
    x = x.astype(compute_dtype)

    # --- batch tiling: big tiles, right-sized last tile, >=2 tiles for v7x ---
    padded8 = _round_up(batch, 8)
    if min_batch_tiles is None:
        # v7x has 2 TensorCores; >=2 batch tiles let "parallel" semantics use
        # both.  Extra grid steps are ~0.35 us each -> noise on 1-TC chips.
        min_batch_tiles = 2 if padded8 >= 64 else 1
    num_tiles = max(_cdiv(padded8, max_block_b), min_batch_tiles)
    num_tiles = max(min(num_tiles, padded8 // 8), 1)
    block_b = _round_up(_cdiv(padded8, num_tiles), 8)
    padded_b = _round_up(batch, block_b)
    if padded_b != batch:
        x = jnp.pad(x, ((0, padded_b - batch), (0, 0)))

    # Advisory cost estimate so XLA overlaps this light call with neighbors.
    itemsize = jnp.dtype(compute_dtype).itemsize
    out_itemsize = jnp.dtype(out_dtype).itemsize
    weight_bytes = (w1.size + w2.size + wh.size) * itemsize + (b12.size + bh.size) * 4
    cost = pl.CostEstimate(
        flops=2 * padded_b * (input_dim * hidden + hidden * hidden + hidden * head_pad),
        transcendentals=0,
        bytes_accessed=padded_b * (input_dim * itemsize + head_pad * out_itemsize)
        + weight_bytes,
    )

    out = pl.pallas_call(
        _actor_critic_kernel,
        out_shape=jax.ShapeDtypeStruct((padded_b, head_pad), out_dtype),
        grid=(padded_b // block_b,),
        in_specs=[
            pl.BlockSpec((block_b, input_dim), lambda i: (i, 0)),  # x: tiled over batch
            pl.BlockSpec((input_dim, hidden), lambda i: (0, 0)),   # w1: VMEM-resident
            pl.BlockSpec((2, hidden), lambda i: (0, 0)),           # b1|b2 packed (f32)
            pl.BlockSpec((hidden, hidden), lambda i: (0, 0)),      # w2: VMEM-resident
            pl.BlockSpec((hidden, head_pad), lambda i: (0, 0)),    # fused head weight
            pl.BlockSpec((1, head_pad), lambda i: (0, 0)),         # fused head bias (f32)
        ],
        out_specs=pl.BlockSpec((block_b, head_pad), lambda i: (i, 0)),
        compiler_params=pltpu.CompilerParams(
            dimension_semantics=("parallel",),  # shard batch tiles across v7x TCs
        ),
        cost_estimate=cost,
    )(x, w1, b12, w2, wh, bh)

    # Consumers must slice exactly [:batch, :action_dim] / [:batch, action_dim];
    # padded lanes/rows contain bias-through-zeros garbage by construction.
    logits = out[:batch, :action_dim].astype(jnp.float32)
    value = out[:batch, action_dim].astype(jnp.float32)  # == critic(feat).squeeze(-1)
    return logits, value


def init_params(key, input_dim, hidden_dim, action_dim):
    """Deterministic init mimicking torch.nn.Linear defaults (uniform +/- 1/sqrt(fan_in))."""
    def linear(key, fan_in, fan_out):
        kw, kb = jax.random.split(key)
        bound = 1.0 / jnp.sqrt(jnp.float32(fan_in))
        w = jax.random.uniform(kw, (fan_in, fan_out), jnp.float32, -bound, bound)
        b = jax.random.uniform(kb, (1, fan_out), jnp.float32, -bound, bound)
        return w, b

    k1, k2, k3, k4 = jax.random.split(key, 4)
    w1, b1 = linear(k1, input_dim, hidden_dim)
    w2, b2 = linear(k2, hidden_dim, hidden_dim)
    wa, ba = linear(k3, hidden_dim, action_dim)
    wc, bc = linear(k4, hidden_dim, 1)
    return (w1, b1, w2, b2, wa, ba, wc, bc)


def _reference_forward(x, params):
    """Pure-JAX reference for correctness checking."""
    w1, b1, w2, b2, wa, ba, wc, bc = params
    h1 = jnp.maximum(x @ w1 + b1, 0.0)
    h2 = jnp.maximum(h1 @ w2 + b2, 0.0)
    logits = h2 @ wa + ba
    value = (h2 @ wc + bc).squeeze(-1)
    return logits, value


if __name__ == "__main__":
    # Shapes consistent with the module: flattened observations of dim 64,
    # hidden_dim=32, action_dim = 5 * num_agents with 2 agents -> 10.
    batch, input_dim, hidden_dim, action_dim = 2, 64, 32, 10

    key = jax.random.PRNGKey(0)
    k_params, k_x, k_xl = jax.random.split(key, 3)
    params = init_params(k_params, input_dim, hidden_dim, action_dim)
    x = jax.random.normal(k_x, (batch, input_dim), jnp.float32)

    # --- f32 path at batch=2: exact parity with the reference ---
    packed_f32 = pack_params(params, action_dim, jnp.float32)
    logits, value = actor_critic_forward(x, packed_f32, action_dim)
    logits, value = jax.block_until_ready((logits, value))
    ref_logits, ref_value = _reference_forward(x, params)
    assert logits.shape == (batch, action_dim)
    assert value.shape == (batch,)
    assert jnp.allclose(logits, ref_logits, atol=1e-4, rtol=1e-4)
    assert jnp.allclose(value, ref_value, atol=1e-4, rtol=1e-4)

    # --- rollout-sized batch: exercises the multi-tile "parallel" grid and
    #     the right-sized last tile (300 -> two tiles of 152 rows) ---
    xl = jax.random.normal(k_xl, (300, input_dim), jnp.float32)
    logits_l, value_l = actor_critic_forward(xl, packed_f32, action_dim)
    logits_l, value_l = jax.block_until_ready((logits_l, value_l))
    ref_logits_l, ref_value_l = _reference_forward(xl, params)
    assert jnp.allclose(logits_l, ref_logits_l, atol=1e-4, rtol=1e-4)
    assert jnp.allclose(value_l, ref_value_l, atol=1e-4, rtol=1e-4)

    # --- bf16 I/O path (halves the dominant HBM streams): loose parity ---
    packed_bf16 = pack_params(params, action_dim, jnp.bfloat16)
    logits_b, value_b = actor_critic_forward(
        xl, packed_bf16, action_dim, out_dtype=jnp.bfloat16)
    logits_b, value_b = jax.block_until_ready((logits_b, value_b))
    assert jnp.allclose(logits_b, ref_logits_l, atol=5e-2, rtol=5e-2)
    assert jnp.allclose(value_b, ref_value_l, atol=5e-2, rtol=5e-2)

    # TODO(synk): the stochastic .act() path (Categorical sampling / log_prob)
    # is host-side glue in the original module and is not fused into this
    # kernel (would use pltpu.prng_seed / prng_random_bits if needed).
    print("KERNEL_OK")
</pallas_src>

<mosaic_0001>
module attributes {stable_mosaic.version = 11 : i64} {
  func.func @_actor_critic_kernel(%arg0: i32, %arg1: memref<8x64xf32, #tpu.memory_space<vmem>>, %arg2: memref<64x32xf32, #tpu.memory_space<vmem>>, %arg3: memref<2x32xf32, #tpu.memory_space<vmem>>, %arg4: memref<32x32xf32, #tpu.memory_space<vmem>>, %arg5: memref<32x128xf32, #tpu.memory_space<vmem>>, %arg6: memref<1x128xf32, #tpu.memory_space<vmem>>, %arg7: memref<8x128xf32, #tpu.memory_space<vmem>>) attributes {dimension_semantics = [#tpu.dimension_semantics<parallel>], iteration_bounds = array<i64: 1>, scalar_prefetch = 0 : i64, scratch_operands = 0 : i64, tpu.core_type = #tpu.core_type<tc>, window_params = [{transform_indices = @transform_0, window_bounds = array<i64: 8, 64>}, {pipeline_mode = #tpu.pipeline_mode<synchronous>, transform_indices = @transform_1, window_bounds = array<i64: 64, 32>}, {pipeline_mode = #tpu.pipeline_mode<synchronous>, transform_indices = @transform_2, window_bounds = array<i64: 2, 32>}, {pipeline_mode = #tpu.pipeline_mode<synchronous>, transform_indices = @transform_3, window_bounds = array<i64: 32, 32>}, {pipeline_mode = #tpu.pipeline_mode<synchronous>, transform_indices = @transform_4, window_bounds = array<i64: 32, 128>}, {pipeline_mode = #tpu.pipeline_mode<synchronous>, transform_indices = @transform_5, window_bounds = array<i64: 1, 128>}, {transform_indices = @transform_6, window_bounds = array<i64: 8, 128>}]} {
    %c0 = arith.constant 0 : index
    %c0_0 = arith.constant 0 : index
    %0 = vector.load %arg1[%c0, %c0_0] : memref<8x64xf32, #tpu.memory_space<vmem>>, vector<8x64xf32>
    %c0_1 = arith.constant 0 : index
    %c0_2 = arith.constant 0 : index
    %1 = vector.load %arg2[%c0_1, %c0_2] : memref<64x32xf32, #tpu.memory_space<vmem>>, vector<64x32xf32>
    %cst = arith.constant dense<0.000000e+00> : vector<8x32xf32>
    %2 = tpu.matmul %0, %1, %cst {dimension_numbers = #tpu.dot_dimension_numbers<[1], [0], [0], [1], [0, 0, 1, 1], [], []>} : vector<8x64xf32>, vector<64x32xf32>, vector<8x32xf32> -> vector<8x32xf32>
    %c0_3 = arith.constant 0 : index
    %c0_4 = arith.constant 0 : index
    %3 = vector.load %arg3[%c0_3, %c0_4] : memref<2x32xf32, #tpu.memory_space<vmem>>, vector<1x32xf32>
    %4 = vector.broadcast %3 : vector<1x32xf32> to vector<8x32xf32>
    %5 = arith.addf %2, %4 : vector<8x32xf32>
    %cst_5 = arith.constant 0.000000e+00 : f32
    %6 = vector.broadcast %cst_5 : f32 to vector<8x32xf32>
    %7 = arith.maximumf %5, %6 : vector<8x32xf32>
    %c0_6 = arith.constant 0 : index
    %c0_7 = arith.constant 0 : index
    %8 = vector.load %arg4[%c0_6, %c0_7] : memref<32x32xf32, #tpu.memory_space<vmem>>, vector<32x32xf32>
    %cst_8 = arith.constant dense<0.000000e+00> : vector<8x32xf32>
    %9 = tpu.matmul %7, %8, %cst_8 {dimension_numbers = #tpu.dot_dimension_numbers<[1], [0], [0], [1], [0, 0, 1, 1], [], []>} : vector<8x32xf32>, vector<32x32xf32>, vector<8x32xf32> -> vector<8x32xf32>
    %c1 = arith.constant 1 : index
    %c0_9 = arith.constant 0 : index
    %10 = vector.load %arg3[%c1, %c0_9] : memref<2x32xf32, #tpu.memory_space<vmem>>, vector<1x32xf32>
    %11 = vector.broadcast %10 : vector<1x32xf32> to vector<8x32xf32>
    %12 = arith.addf %9, %11 : vector<8x32xf32>
    %cst_10 = arith.constant 0.000000e+00 : f32
    %13 = vector.broadcast %cst_10 : f32 to vector<8x32xf32>
    %14 = arith.maximumf %12, %13 : vector<8x32xf32>
    %c0_11 = arith.constant 0 : index
    %c0_12 = arith.constant 0 : index
    %15 = vector.load %arg5[%c0_11, %c0_12] : memref<32x128xf32, #tpu.memory_space<vmem>>, vector<32x128xf32>
    %cst_13 = arith.constant dense<0.000000e+00> : vector<8x128xf32>
    %16 = tpu.matmul %14, %15, %cst_13 {dimension_numbers = #tpu.dot_dimension_numbers<[1], [0], [0], [1], [0, 0, 1, 1], [], []>} : vector<8x32xf32>, vector<32x128xf32>, vector<8x128xf32> -> vector<8x128xf32>
    %c0_14 = arith.constant 0 : index
    %c0_15 = arith.constant 0 : index
    %17 = vector.load %arg6[%c0_14, %c0_15] : memref<1x128xf32, #tpu.memory_space<vmem>>, vector<1x128xf32>
    %18 = vector.broadcast %17 : vector<1x128xf32> to vector<8x128xf32>
    %19 = arith.addf %16, %18 : vector<8x128xf32>
    %c0_16 = arith.constant 0 : index
    %c0_17 = arith.constant 0 : index
    %20 = vector.load %arg7[%c0_16, %c0_17] : memref<8x128xf32, #tpu.memory_space<vmem>>, vector<8x128xf32>
    tpu.vector_store %arg7[%c0_16, %c0_17], %19 {strides = array<i32>} : memref<8x128xf32, #tpu.memory_space<vmem>>, vector<8x128xf32>,
    return
  }
  func.func @transform_0(%arg0: i32) -> (i32, i32) {
    %c0_i32 = arith.constant 0 : i32
    %c0_i32_0 = arith.constant 0 : i32
    return %arg0, %c0_i32 : i32, i32
  }
  func.func @transform_1(%arg0: i32) -> (i32, i32) {
    %c0_i32 = arith.constant 0 : i32
    %c0_i32_0 = arith.constant 0 : i32
    %c0_i32_1 = arith.constant 0 : i32
    return %c0_i32, %c0_i32_0 : i32, i32
  }
  func.func @transform_2(%arg0: i32) -> (i32, i32) {
    %c0_i32 = arith.constant 0 : i32
    %c0_i32_0 = arith.constant 0 : i32
    %c0_i32_1 = arith.constant 0 : i32
    return %c0_i32, %c0_i32_0 : i32, i32
  }
  func.func @transform_3(%arg0: i32) -> (i32, i32) {
    %c0_i32 = arith.constant 0 : i32
    %c0_i32_0 = arith.constant 0 : i32
    %c0_i32_1 = arith.constant 0 : i32
    return %c0_i32, %c0_i32_0 : i32, i32
  }
  func.func @transform_4(%arg0: i32) -> (i32, i32) {
    %c0_i32 = arith.constant 0 : i32
    %c0_i32_0 = arith.constant 0 : i32
    %c0_i32_1 = arith.constant 0 : i32
    return %c0_i32, %c0_i32_0 : i32, i32
  }
  func.func @transform_5(%arg0: i32) -> (i32, i32) {
    %c0_i32 = arith.constant 0 : i32
    %c0_i32_0 = arith.constant 0 : i32
    %c0_i32_1 = arith.constant 0 : i32
    return %c0_i32, %c0_i32_0 : i32, i32
  }
  func.func @transform_6(%arg0: i32) -> (i32, i32) {
    %c0_i32 = arith.constant 0 : i32
    %c0_i32_0 = arith.constant 0 : i32
    return %arg0, %c0_i32 : i32, i32
  }
}

</mosaic_0001>

<llo_original>
// kernel: tpu_custom_call.1
$region0: #{tpu_custom_call.1}
  #allocation0 [shape = 'u32[]', space=smem, size = 0x4, offset = 0x4, fixed_abs, tag = 'smem constant byte address 0x4 - core index']
  #allocation1 [shape = 'u32[144,128]{1,0:T(1,128)}', space=vmem, size = 0x12000, scoped, tag = 'internal scratch']
  %s0 = inlined_call_operand.vmem [shape: f32[8,64], index: 0, kind: input, shape index: {}]
  %s1 = inlined_call_operand.vmem [shape: f32[64,32], index: 1, kind: input, shape index: {}]
  %s2 = inlined_call_operand.vmem [shape: f32[2,32], index: 2, kind: input, shape index: {}]
  %s3 = inlined_call_operand.vmem [shape: f32[32,32], index: 3, kind: input, shape index: {}]
  %s4 = inlined_call_operand.vmem [shape: f32[32,128], index: 4, kind: input, shape index: {}]
  %s5 = inlined_call_operand.vmem [shape: f32[1,128], index: 5, kind: input, shape index: {}]
  %s6 = inlined_call_operand.hbm [shape: f32[8,128], index: 6, kind: output, shape index: {}]
  %s7 = sld [smem:[#allocation0]]
  $region34: #{tpu_custom_call.1} parent=0
    _
  %s9 = ssub.s32 1, %s7
  %s10 = scalar_select 0, %s9, %s7
  $region1: #{tpu_custom_call.1} parent=0
    #allocation2 [shape = 'u8[4096]{0}', space=vmem, size = 0x1000, scoped, tag = 'output window, operand 0, single buffered']
    #allocation3 [shape = 's32[1]{0}', space=sflag, size = 0x4, scoped, tag = 'scoped memory for tpu_custom_call.1']
    %11 = vsyncpa [#allocation3], 0
    // Predicated region
    $region2: #{tpu_custom_call.1} parent=1 // pred_check
      _
    $region3: #{tpu_custom_call.1} parent=1 // pred_check_branch
      %13 = sbr.rel (0) target = $region5
    $region4: #{tpu_custom_call.1} parent=1 // pred_region
      _
    $region5: #{tpu_custom_call.1} parent=1 // pred_fallthru
      _
    // Predicated region
    $region6: #{tpu_custom_call.1} parent=1 // pred_check
      _
    $region7: #{tpu_custom_call.1} parent=1 // pred_check_branch
      %15 = sbr.rel (0) target = $region9
    $region8: #{tpu_custom_call.1} parent=1 // pred_region
      _
    $region9: #{tpu_custom_call.1} parent=1 // pred_fallthru
      _
    // Predicated region
    $region10: #{tpu_custom_call.1} parent=1 // pred_check
      _
    $region11: #{tpu_custom_call.1} parent=1 // pred_check_branch
      %17 = sbr.rel (0) target = $region13
    $region12: #{tpu_custom_call.1} parent=1 // pred_region
      _
    $region13: #{tpu_custom_call.1} parent=1 // pred_fallthru
      _
    // Predicated region
    $region14: #{tpu_custom_call.1} parent=1 // pred_check
      _
    $region15: #{tpu_custom_call.1} parent=1 // pred_check_branch
      %19 = sbr.rel (0) target = $region17
    $region16: #{tpu_custom_call.1} parent=1 // pred_region
      _
    $region17: #{tpu_custom_call.1} parent=1 // pred_fallthru
      _
    // Predicated region
    $region18: #{tpu_custom_call.1} parent=1 // pred_check
      _
    $region19: #{tpu_custom_call.1} parent=1 // pred_check_branch
      %21 = sbr.rel (0) target = $region21
    $region20: #{tpu_custom_call.1} parent=1 // pred_region
      _
    $region21: #{tpu_custom_call.1} parent=1 // pred_fallthru
      _
    // Predicated region
    $region22: #{tpu_custom_call.1} parent=1 // pred_check
      _
    $region23: #{tpu_custom_call.1} parent=1 // pred_check_branch
      %23 = sbr.rel (0) target = $region25
    $region24: #{tpu_custom_call.1} parent=1 // pred_region
      _
    $region25: #{tpu_custom_call.1} parent=1 // pred_fallthru
      _
    %v24 = vld [vmem:[%s0] sm:$0xff]
    %v25 = vld [vmem:[%s1] sm:$0xff]
    %v26 = vld [vmem:[%s1 + $0x8] sm:$0xff]
    %v27 = vld [vmem:[%s1 + $0x10] sm:$0xff]
    %v28 = vld [vmem:[%s1 + $0x18] sm:$0xff]
    %v29 = vld [vmem:[%s1 + $0x20] sm:$0xff]
    %v30 = vld [vmem:[%s1 + $0x28] sm:$0xff]
    %v31 = vld [vmem:[%s1 + $0x30] sm:$0xff]
    %v32 = vld [vmem:[%s1 + $0x38] sm:$0xff]
    %v33 = vld [vmem:[%s2] sm:$0x1]
    %v34 = vlaneseq
    %v35 = vshrl.u32 %v34, 7
    %v36 = vsub.s32 0, %v35
    %v37 = vrot.slane %v33, %v36
    %vm38 = vcmask 523264
    %v40 = vsel %vm38, %v24, 0
    %42 = vmatprep.subr.mxu0 0.0
    %43 = vmatpush1.msra.mxu0 %v25
    %44 = vmatprep.subr.mxu0 0.0
    %45 = vmatpush1.msra.mxu0 %v26
    %46 = vmatprep.subr.mxu0 0.0
    %47 = vmatpush1.msra.mxu0 %v27
    %48 = vmatprep.subr.mxu0 0.0
    %49 = vmatpush1.msra.mxu0 %v28
    %50 = vmatprep.subr.mxu0 0.0
    %51 = vmatpush1.msra.mxu0 %v29
    %52 = vmatprep.subr.mxu0 0.0
    %53 = vmatpush1.msra.mxu0 %v30
    %54 = vmatprep.subr.mxu0 0.0
    %55 = vmatpush1.msra.mxu0 %v31
    %56 = vmatprep.subr.mxu0 0.0
    %57 = vmatpush1.msra.mxu0 %v32
    %58 = vmatprep.subr.mxu0 0.0
    %59 = vmatpush1.msra.mxu0 0.0
    %60 = vmatprep.subr.mxu0 0.0
    %61 = vmatpush1.msra.mxu0 0.0
    %62 = vmatprep.subr.mxu0 0.0
    %63 = vmatpush1.msra.mxu0 0.0
    %64 = vmatprep.subr.mxu0 0.0
    %65 = vmatpush1.msra.mxu0 0.0
    %66 = vmatprep.subr.mxu0 0.0
    %67 = vmatpush1.msra.mxu0 0.0
    %68 = vmatprep.subr.mxu0 0.0
    %69 = vmatpush1.msra.mxu0 0.0
    %70 = vmatprep.subr.mxu0 0.0
    %71 = vmatpush1.msra.mxu0 0.0
    %72 = vmatprep.subr.mxu0 0.0
    %73 = vmatpush1.msra.mxu0 0.0
    %74 = vmatprep.subr.mxu0 0.0
    %75 = vmatpush1.msra.mxu0 0.0
    %76 = vmatprep.subr.mxu0 0.0
    %77 = vmatpush1.msra.mxu0 0.0
    %78 = vmatprep.subr.mxu0 0.0
    %79 = vmatpush1.msra.mxu0 0.0
    %80 = vmatprep.subr.mxu0 0.0
    %81 = vmatpush1.msra.mxu0 0.0
    %82 = vmatprep.subr.mxu0 0.0
    %83 = vmatpush1.msra.mxu0 0.0
    %84 = vmatprep.subr.mxu0 0.0
    %85 = vmatpush1.msra.mxu0 0.0
    %86 = vmatprep.subr.mxu0 0.0
    %87 = vmatpush1.msra.mxu0 0.0
    %88 = vmatprep.subr.mxu0 0.0
    %89 = vmatpush1.msra.mxu0 0.0
    %90 = vmatprep.subr.mxu0 0.0
    %91 = vmatpush1.msra.mxu0 0.0
    %92 = vmatprep.subr.mxu0 0.0
    %93 = vmatpush1.msra.mxu0 0.0
    %94 = vmatprep.subr.mxu0 0.0
    %95 = vmatpush1.msra.mxu0 0.0
    %96 = vmatprep.subr.mxu0 0.0
    %97 = vmatpush1.msra.mxu0 0.0
    %98 = vmatprep.subr.mxu0 0.0
    %99 = vmatpush1.msra.mxu0 0.0
    %100 = vmatprep.subr.mxu0 0.0
    %101 = vmatpush1.msra.mxu0 0.0
    %102 = vmatprep.subr.mxu0 0.0
    %103 = vmatpush1.msra.mxu0 0.0
    %104 = vmatprep.subr.mxu0 0.0
    %105 = vmatpush1.msra.mxu0 0.0
    %106 = vmatprep.mubr.f32.mxu0 0.0
    %107 = vmatmul.mubr.f32.gmra.mrb[0].mxu0 %v40
    %v108 = vpop.f32.mrb[0].mxu0
    %v109 = vadd.f32 %v37, %v108
    %v110 = vpop.f32.mrb[0].mxu0
    %111 = vdwg.mxu0
    %v112 = vmax.f32 %v109, 0.0
    %v113 = vld [vmem:[%s3] sm:$0xff]
    %v114 = vld [vmem:[%s3 + $0x8] sm:$0xff]
    %v115 = vld [vmem:[%s3 + $0x10] sm:$0xff]
    %v116 = vld [vmem:[%s3 + $0x18] sm:$0xff]
    %v117 = vld [vmem:[%s2 + $0x1] sm:$0x1]
    %v118 = vlaneseq
    %v119 = vshrl.u32 %v118, 7
    %v120 = vsub.s32 0, %v119
    %v121 = vrot.slane %v117, %v120
    %vm122 = vcmask 261120
    %v124 = vsel %vm122, %v112, 0
    %126 = vmatprep.subr.mxu0 0.0
    %127 = vmatpush1.msra.mxu0 %v113
    %128 = vmatprep.subr.mxu0 0.0
    %129 = vmatpush1.msra.mxu0 %v114
    %130 = vmatprep.subr.mxu0 0.0
    %131 = vmatpush1.msra.mxu0 %v115
    %132 = vmatprep.subr.mxu0 0.0
    %133 = vmatpush1.msra.mxu0 %v116
    %134 = vmatprep.subr.mxu0 0.0
    %135 = vmatpush1.msra.mxu0 0.0
    %136 = vmatprep.subr.mxu0 0.0
    %137 = vmatpush1.msra.mxu0 0.0
    %138 = vmatprep.subr.mxu0 0.0
    %139 = vmatpush1.msra.mxu0 0.0
    %140 = vmatprep.subr.mxu0 0.0
    %141 = vmatpush1.msra.mxu0 0.0
    %142 = vmatprep.subr.mxu0 0.0
    %143 = vmatpush1.msra.mxu0 0.0
    %144 = vmatprep.subr.mxu0 0.0
    %145 = vmatpush1.msra.mxu0 0.0
    %146 = vmatprep.subr.mxu0 0.0
    %147 = vmatpush1.msra.mxu0 0.0
    %148 = vmatprep.subr.mxu0 0.0
    %149 = vmatpush1.msra.mxu0 0.0
    %150 = vmatprep.subr.mxu0 0.0
    %151 = vmatpush1.msra.mxu0 0.0
    %152 = vmatprep.subr.mxu0 0.0
    %153 = vmatpush1.msra.mxu0 0.0
    %154 = vmatprep.subr.mxu0 0.0
    %155 = vmatpush1.msra.mxu0 0.0
    %156 = vmatprep.subr.mxu0 0.0
    %157 = vmatpush1.msra.mxu0 0.0
    %158 = vmatprep.subr.mxu0 0.0
    %159 = vmatpush1.msra.mxu0 0.0
    %160 = vmatprep.subr.mxu0 0.0
    %161 = vmatpush1.msra.mxu0 0.0
    %162 = vmatprep.subr.mxu0 0.0
    %163 = vmatpush1.msra.mxu0 0.0
    %164 = vmatprep.subr.mxu0 0.0
    %165 = vmatpush1.msra.mxu0 0.0
    %166 = vmatprep.subr.mxu0 0.0
    %167 = vmatpush1.msra.mxu0 0.0
    %168 = vmatprep.subr.mxu0 0.0
    %169 = vmatpush1.msra.mxu0 0.0
    %170 = vmatprep.subr.mxu0 0.0
    %171 = vmatpush1.msra.mxu0 0.0
    %172 = vmatprep.subr.mxu0 0.0
    %173 = vmatpush1.msra.mxu0 0.0
    %174 = vmatprep.subr.mxu0 0.0
    %175 = vmatpush1.msra.mxu0 0.0
    %176 = vmatprep.subr.mxu0 0.0
    %177 = vmatpush1.msra.mxu0 0.0
    %178 = vmatprep.subr.mxu0 0.0
    %179 = vmatpush1.msra.mxu0 0.0
    %180 = vmatprep.subr.mxu0 0.0
    %181 = vmatpush1.msra.mxu0 0.0
    %182 = vmatprep.subr.mxu0 0.0
    %183 = vmatpush1.msra.mxu0 0.0
    %184 = vmatprep.subr.mxu0 0.0
    %185 = vmatpush1.msra.mxu0 0.0
    %186 = vmatprep.subr.mxu0 0.0
    %187 = vmatpush1.msra.mxu0 0.0
    %188 = vmatprep.subr.mxu0 0.0
    %189 = vmatpush1.msra.mxu0 0.0
    %190 = vmatprep.mubr.f32.mxu0 0.0
    %191 = vmatmul.mubr.f32.gmra.mrb[0].mxu0 %v124
    %v192 = vpop.f32.mrb[0].mxu0
    %v193 = vadd.f32 %v121, %v192
    %v194 = vpop.f32.mrb[0].mxu0
    %195 = vdwg.mxu0
    %v196 = vmax.f32 %v193, 0.0
    %v197 = vld [vmem:[%s4] sm:$0xff]
    %v198 = vld [vmem:[%s4 + $0x8] sm:$0xff]
    %v199 = vld [vmem:[%s4 + $0x10] sm:$0xff]
    %v200 = vld [vmem:[%s4 + $0x18] sm:$0xff]
    %v201 = vld [vmem:[%s5] sm:$0x1]
    %v203 = vlaneseq
    %v204 = vshrl.u32 %v203, 7
    %v205 = vsub.s32 0, %v204
    %v206 = vrot.slane %v201, %v205
    %v209 = vsel %vm122, %v196, 0
    %211 = vmatprep.subr.mxu0 0.0
    %212 = vmatpush1.msra.mxu0 %v197
    %213 = vmatprep.subr.mxu0 0.0
    %214 = vmatpush1.msra.mxu0 %v198
    %215 = vmatprep.subr.mxu0 0.0
    %216 = vmatpush1.msra.mxu0 %v199
    %217 = vmatprep.subr.mxu0 0.0
    %218 = vmatpush1.msra.mxu0 %v200
    %219 = vmatprep.subr.mxu0 0.0
    %220 = vmatpush1.msra.mxu0 0.0
    %221 = vmatprep.subr.mxu0 0.0
    %222 = vmatpush1.msra.mxu0 0.0
    %223 = vmatprep.subr.mxu0 0.0
    %224 = vmatpush1.msra.mxu0 0.0
    %225 = vmatprep.subr.mxu0 0.0
    %226 = vmatpush1.msra.mxu0 0.0
    %227 = vmatprep.subr.mxu0 0.0
    %228 = vmatpush1.msra.mxu0 0.0
    %229 = vmatprep.subr.mxu0 0.0
    %230 = vmatpush1.msra.mxu0 0.0
    %231 = vmatprep.subr.mxu0 0.0
    %232 = vmatpush1.msra.mxu0 0.0
    %233 = vmatprep.subr.mxu0 0.0
    %234 = vmatpush1.msra.mxu0 0.0
    %235 = vmatprep.subr.mxu0 0.0
    %236 = vmatpush1.msra.mxu0 0.0
    %237 = vmatprep.subr.mxu0 0.0
    %238 = vmatpush1.msra.mxu0 0.0
    %239 = vmatprep.subr.mxu0 0.0
    %240 = vmatpush1.msra.mxu0 0.0
    %241 = vmatprep.subr.mxu0 0.0
    %242 = vmatpush1.msra.mxu0 0.0
    %243 = vmatprep.subr.mxu0 0.0
    %244 = vmatpush1.msra.mxu0 0.0
    %245 = vmatprep.subr.mxu0 0.0
    %246 = vmatpush1.msra.mxu0 0.0
    %247 = vmatprep.subr.mxu0 0.0
    %248 = vmatpush1.msra.mxu0 0.0
    %249 = vmatprep.subr.mxu0 0.0
    %250 = vmatpush1.msra.mxu0 0.0
    %251 = vmatprep.subr.mxu0 0.0
    %252 = vmatpush1.msra.mxu0 0.0
    %253 = vmatprep.subr.mxu0 0.0
    %254 = vmatpush1.msra.mxu0 0.0
    %255 = vmatprep.subr.mxu0 0.0
    %256 = vmatpush1.msra.mxu0 0.0
    %257 = vmatprep.subr.mxu0 0.0
    %258 = vmatpush1.msra.mxu0 0.0
    %259 = vmatprep.subr.mxu0 0.0
    %260 = vmatpush1.msra.mxu0 0.0
    %261 = vmatprep.subr.mxu0 0.0
    %262 = vmatpush1.msra.mxu0 0.0
    %263 = vmatprep.subr.mxu0 0.0
    %264 = vmatpush1.msra.mxu0 0.0
    %265 = vmatprep.subr.mxu0 0.0
    %266 = vmatpush1.msra.mxu0 0.0
    %267 = vmatprep.subr.mxu0 0.0
    %268 = vmatpush1.msra.mxu0 0.0
    %269 = vmatprep.subr.mxu0 0.0
    %270 = vmatpush1.msra.mxu0 0.0
    %271 = vmatprep.subr.mxu0 0.0
    %272 = vmatpush1.msra.mxu0 0.0
    %273 = vmatprep.subr.mxu0 0.0
    %274 = vmatpush1.msra.mxu0 0.0
    %275 = vmatprep.mubr.f32.mxu0 0.0
    %276 = vmatmul.mubr.f32.gmra.mrb[0].mxu0 %v209
    %v277 = vpop.f32.mrb[0].mxu0
    %v278 = vadd.f32 %v206, %v277
    %v279 = vpop.f32.mrb[0].mxu0
    %280 = vdwg.mxu0
    %281 = vst [vmem:[#allocation2] sm:$0xff] %v278
    // Predicated region
    $region26: #{tpu_custom_call.1} parent=1 // pred_check
      _
    $region27: #{tpu_custom_call.1} parent=1 // pred_check_branch
      %283 = sbr.rel (0) target = $region29
    $region28: #{tpu_custom_call.1} parent=1 // pred_region
      %s285 = ssub.s32 128, 128
      %286 = vsyncadd [#allocation3], %s285
      %s288 = sshll.u32 [#allocation2], 4
      %s289 = int_to_ptr.vmem [resolvable:$true] %s288
      %291 = dma.vmem_to_hbm [thread:$0]  %s289, 128, %s6, [#allocation3]
    $region29: #{tpu_custom_call.1} parent=1 // pred_fallthru
      _
    // Predicated region
    $region30: #{tpu_custom_call.1} parent=1 // pred_check
      _
    $region31: #{tpu_custom_call.1} parent=1 // pred_check_branch
      %293 = sbr.rel (0) target = $region33
    $region32: #{tpu_custom_call.1} parent=1 // pred_region
      %294 = dma.done [#allocation3], 128
    $region33: #{tpu_custom_call.1} parent=1 // pred_fallthru
      _
    %295 = vsyncpa [#allocation3], 1

</llo_original>
